<compile_context>
chip_gen: v6e
topology: v6e:2x2x1
jax: 0.10.0
libtpu: 0.0.40
codegen_flags: <defaults>
</compile_context>

<pallas_src>
import functools

import jax
import jax.numpy as jnp
from jax.experimental import pallas as pl
from jax.experimental.pallas import tpu as pltpu


def _round_up(x, m):
    return ((x + m - 1) // m) * m


def cam_kernel(gamma_ref, x_ref, o_ref, acc_ref, attn_ref, *stash, nt, use_stash):
    # gamma_ref: (1, 1) f32 scalar in SMEM
    # x_ref:     (c, tile_n) chunk of the current batch element (VMEM)
    # o_ref:     (c, tile_n) output chunk (VMEM), written only in phase 2
    # acc_ref:   (c, c) f32 energy accumulator
    # attn_ref:  (c, c) gamma-scaled attention in the compute dtype
    # stash:     optional (nt, c, tile_n) VMEM stash of the x chunks
    stash_ref = stash[0] if use_stash else None
    k = pl.program_id(1)

    @pl.when(k == 0)
    def _zero():
        acc_ref[...] = jnp.zeros_like(acc_ref)

    # ---- phase 1: energy = X @ X^T accumulated over spatial chunks ----------
    @pl.when(k < nt)
    def _accumulate():
        x = x_ref[...]                       # native dtype -> MXU at full rate
        # Contract the lane (spatial) axis of both operands -> (c, c).
        # TODO(synk): if the bundle dump shows the implied transpose (vxpose)
        # saturating the vector-extended slot at large c, switch orientation.
        acc_ref[...] += jax.lax.dot_general(
            x, x, (((1,), (1,)), ((), ())),
            preferred_element_type=jnp.float32)
        if use_stash:
            stash_ref[k] = x                 # keep the chunk resident in VMEM

    # ---- k == nt: energy -> gamma * softmax(rowmax(E) - E), cast once -------
    @pl.when(k == nt)
    def _softmax():
        energy = acc_ref[...]
        # softmax(rowmax(E) - E) == exp(rowmin(E) - E) / sum: one row
        # reduction, numerically stable.  Exact division (no approx
        # reciprocal) so the result matches the reference to f32 accuracy.
        e = jnp.exp(jnp.min(energy, axis=-1, keepdims=True) - energy)
        attn = e / jnp.sum(e, axis=-1, keepdims=True)
        attn_ref[...] = (gamma_ref[0, 0] * attn).astype(attn_ref.dtype)

    # ---- phase 2: out_chunk = attn_scaled @ x_chunk + x_chunk ----------------
    @pl.when(k >= nt)
    def _emit():
        if use_stash:
            xj = stash_ref[k - nt]           # VMEM read, zero extra HBM traffic
        else:
            xj = x_ref[...]                  # second HBM pass over x
        out = jnp.dot(attn_ref[...], xj, preferred_element_type=jnp.float32)
        o_ref[...] = (out + xj.astype(jnp.float32)).astype(o_ref.dtype)


def _vmem_budget_bytes():
    """Planning budget: ~75% of physical VMEM (48 MiB on v7x's 64 MiB,
    96 MiB on v5e/v6e's 128 MiB); conservative fallback if unqueryable."""
    cap = 64 << 20
    try:
        info = pltpu.get_tpu_info()
        cap = int(getattr(info, "vmem_capacity_bytes", cap) or cap)
    except Exception:
        pass
    return max(16 << 20, (3 * cap) // 4)


def _plan(n, c, itemsize, budget):
    """Pick (tile_n, n_pad, use_stash). tile_n is a multiple of 128 (lane
    dense); n is padded up to a multiple of tile_n (zero padding is exact for
    this op); use_stash says whether the whole (c, n_pad) slab fits VMEM."""
    mats = c * c * (4 + itemsize)            # f32 energy acc + scaled attention

    def stream_need(t):                      # 2x double-buffered in + out chunks
        return 4 * c * t * itemsize + mats

    cap = min(_round_up(n, 128), 2048)       # big tiles amortize per-step cost
    cands = []
    for t in range(128, cap + 1, 128):
        if stream_need(t) <= budget:
            cands.append((_round_up(n, t), -t, t))
    if not cands:                            # huge c: smallest legal tile
        return 128, _round_up(n, 128), False
    cands.sort()                             # least padding, then largest tile
    for n_pad, _, t in cands:                # prefer a plan whose stash fits:
        if stream_need(t) + c * n_pad * itemsize <= budget:
            return t, n_pad, True            # -> x read from HBM exactly once
    n_pad, _, t = cands[0]
    return t, n_pad, False                   # -> stream x twice (fallback)


def cam_forward(x, gamma, *, use_stash=None, plan_budget_bytes=None):
    """x: (b, c, h, w); gamma: shape-(1,) parameter (zero-init in the module)."""
    b, c, h, w = x.shape
    n = h * w
    itemsize = jnp.dtype(x.dtype).itemsize

    hw_budget = _vmem_budget_bytes()
    budget = min(plan_budget_bytes, hw_budget) if plan_budget_bytes else hw_budget
    tile_n, n_pad, stash_ok = _plan(n, c, itemsize, budget)
    use_stash = stash_ok if use_stash is None else (bool(use_stash) and stash_ok)
    nt = n_pad // tile_n

    x_flat = x.reshape(b, c, n)
    if n_pad != n:
        # Zero padding on the lane axis is exact: it contributes nothing to the
        # energy, and the padded output columns are dropped below.
        x_flat = jnp.pad(x_flat, ((0, 0), (0, 0), (0, n_pad - n)))
    gamma2d = jnp.reshape(gamma, (1, 1)).astype(jnp.float32)

    if use_stash:
        # Pin the phase-2 x block index: the pipeliner only issues a DMA when
        # the block index changes, so x is read from HBM exactly once.
        x_map = lambda i, k: (i, 0, jnp.minimum(k, nt - 1))
    else:
        x_map = lambda i, k: (i, 0, k % nt)
    # Output block index stays 0 through phase 1 and is never written there;
    # it is only flushed to HBM after phase 2 has written it (revisit
    # semantics: write-back happens when the block index changes / at the end).
    o_map = lambda i, k: (i, 0, jnp.maximum(k - nt, 0))

    scratch = [pltpu.VMEM((c, c), jnp.float32),    # energy accumulator
               pltpu.VMEM((c, c), x.dtype)]        # gamma * softmax (hoisted)
    if use_stash:
        scratch.append(pltpu.VMEM((nt, c, tile_n), x.dtype))

    need = 4 * c * tile_n * itemsize + c * c * (4 + itemsize)
    if use_stash:
        need += c * n_pad * itemsize
    vmem_limit = int(min(hw_budget, max(32 << 20, 4 * need)))

    kernel = functools.partial(cam_kernel, nt=nt, use_stash=use_stash)
    out_flat = pl.pallas_call(
        kernel,
        out_shape=jax.ShapeDtypeStruct((b, c, n_pad), x.dtype),
        grid=(b, 2 * nt),
        in_specs=[
            pl.BlockSpec(memory_space=pltpu.MemorySpace.SMEM),   # gamma scalar
            pl.BlockSpec((None, c, tile_n), x_map),              # x chunks
        ],
        out_specs=pl.BlockSpec((None, c, tile_n), o_map),
        scratch_shapes=scratch,
        compiler_params=pltpu.CompilerParams(
            # Batch axis feeds megacore sharding on v7x (best when b % 2 == 0);
            # the chunk axis carries the accumulator so it stays "arbitrary".
            dimension_semantics=("parallel", "arbitrary"),
            vmem_limit_bytes=vmem_limit),
    )(gamma2d, x_flat)

    if n_pad != n:
        out_flat = out_flat[:, :, :n]
    return out_flat.reshape(b, c, h, w)


def cam_ref(x, gamma):
    """Pure-JAX reference mirroring the PyTorch forward (f32, highest precision)."""
    b, c, h, w = x.shape
    q = x.reshape(b, c, -1).astype(jnp.float32)
    energy = jnp.einsum('bcn,bdn->bcd', q, q,
                        precision=jax.lax.Precision.HIGHEST)
    energy_new = jnp.max(energy, axis=-1, keepdims=True) - energy
    attn = jax.nn.softmax(energy_new, axis=-1)
    out = jnp.einsum('bcd,bdn->bcn', attn, q,
                     precision=jax.lax.Precision.HIGHEST).reshape(b, c, h, w)
    return (gamma.reshape(()).astype(jnp.float32) * out
            + x.astype(jnp.float32)).astype(x.dtype)


if __name__ == "__main__":
    key = jax.random.PRNGKey(0)
    k1, k2, k3 = jax.random.split(key, 3)
    tol = dict(atol=2e-3, rtol=2e-3)

    g0 = jnp.zeros((1,), dtype=jnp.float32)          # module init: gamma = 0
    g1 = jnp.full((1,), 0.5, dtype=jnp.float32)      # non-trivial gamma

    # --- Test 1: small module-like shape, single tile, auto (stash) path ----
    x1 = 0.1 * jax.random.normal(k1, (2, 4, 16, 16), dtype=jnp.float32)
    out = cam_forward(x1, g0)
    jax.block_until_ready(out)
    assert jnp.allclose(out, cam_ref(x1, g0), **tol)
    out = cam_forward(x1, g1)
    jax.block_until_ready(out)
    assert jnp.allclose(out, cam_ref(x1, g1), **tol)

    # --- Test 2: multi-tile shape. (a) small planning budget forces the
    # multi-chunk VMEM stash (single HBM read of x); (b) forced two-pass
    # streaming fallback exercises the re-read path. -------------------------
    x2 = 0.1 * jax.random.normal(k2, (2, 8, 48, 48), dtype=jnp.float32)
    ref2 = cam_ref(x2, g1)
    out2a = cam_forward(x2, g1, plan_budget_bytes=150_000)   # tile=384, nt=6, stash
    jax.block_until_ready(out2a)
    assert jnp.allclose(out2a, ref2, **tol)
    out2b = cam_forward(x2, g1, use_stash=False)             # streaming fallback
    jax.block_until_ready(out2b)
    assert jnp.allclose(out2b, ref2, **tol)

    # --- Test 3: spatial size with no multiple-of-128 divisor -> lane padding
    x3 = 0.1 * jax.random.normal(k3, (2, 8, 18, 18), dtype=jnp.float32)
    out3 = cam_forward(x3, g1)
    jax.block_until_ready(out3)
    assert jnp.allclose(out3, cam_ref(x3, g1), **tol)

    print("KERNEL_OK")
</pallas_src>

<mosaic_0001>
module attributes {stable_mosaic.version = 11 : i64} {
  func.func @cam_kernel(%arg0: i32, %arg1: i32, %arg2: memref<1x1xf32, #tpu.memory_space<smem>>, %arg3: memref<1x4x256xf32, #tpu.memory_space<vmem>>, %arg4: memref<1x4x256xf32, #tpu.memory_space<vmem>>, %arg5: memref<4x4xf32, #tpu.memory_space<vmem>>, %arg6: memref<4x4xf32, #tpu.memory_space<vmem>>, %arg7: memref<1x4x256xf32, #tpu.memory_space<vmem>>) attributes {dimension_semantics = [#tpu.dimension_semantics<parallel>, #tpu.dimension_semantics<arbitrary>], iteration_bounds = array<i64: 2, 2>, scalar_prefetch = 0 : i64, scratch_operands = 3 : i64, tpu.core_type = #tpu.core_type<tc>, window_params = [{transform_indices = @transform_0, window_bounds = array<i64: 1, 1>}, {transform_indices = @transform_1, window_bounds = array<i64: 1, 4, 256>}, {transform_indices = @transform_2, window_bounds = array<i64: 1, 4, 256>}]} {
    %c0_i32 = arith.constant 0 : i32
    %0 = arith.cmpi eq, %arg1, %c0_i32 : i32
    %1 = arith.extui %0 : i1 to i32
    %c0_i32_0 = arith.constant 0 : i32
    %2 = arith.cmpi ne, %1, %c0_i32_0 : i32
    scf.if %2 {
      %cst = arith.constant 0.000000e+00 : f32
      %12 = vector.broadcast %cst : f32 to vector<4x4xf32>
      %c0 = arith.constant 0 : index
      %c0_6 = arith.constant 0 : index
      %13 = vector.load %arg5[%c0, %c0_6] : memref<4x4xf32, #tpu.memory_space<vmem>>, vector<4x4xf32>
      tpu.vector_store %arg5[%c0, %c0_6], %12 {strides = array<i32>} : memref<4x4xf32, #tpu.memory_space<vmem>>, vector<4x4xf32>,
    } else {
    }
    %c1_i32 = arith.constant 1 : i32
    %3 = arith.cmpi slt, %arg1, %c1_i32 : i32
    %4 = arith.extui %3 : i1 to i32
    %c0_i32_1 = arith.constant 0 : i32
    %5 = arith.cmpi ne, %4, %c0_i32_1 : i32
    scf.if %5 {
      %c0 = arith.constant 0 : index
      %c0_6 = arith.constant 0 : index
      %c0_7 = arith.constant 0 : index
      %12 = vector.load %arg3[%c0, %c0_6, %c0_7] : memref<1x4x256xf32, #tpu.memory_space<vmem>>, vector<1x4x256xf32>
      %13 = vector.shape_cast %12 : vector<1x4x256xf32> to vector<4x256xf32>
      %c0_8 = arith.constant 0 : index
      %c0_9 = arith.constant 0 : index
      %14 = vector.load %arg5[%c0_8, %c0_9] : memref<4x4xf32, #tpu.memory_space<vmem>>, vector<4x4xf32>
      %cst = arith.constant dense<0.000000e+00> : vector<4x4xf32>
      %15 = tpu.matmul %13, %13, %cst {dimension_numbers = #tpu.dot_dimension_numbers<[1], [1], [0], [0], [0, 0, 1, 0], [], []>} : vector<4x256xf32>, vector<4x256xf32>, vector<4x4xf32> -> vector<4x4xf32>
      %16 = arith.addf %14, %15 : vector<4x4xf32>
      %c0_10 = arith.constant 0 : index
      %c0_11 = arith.constant 0 : index
      %17 = vector.load %arg5[%c0_10, %c0_11] : memref<4x4xf32, #tpu.memory_space<vmem>>, vector<4x4xf32>
      tpu.vector_store %arg5[%c0_10, %c0_11], %16 {strides = array<i32>} : memref<4x4xf32, #tpu.memory_space<vmem>>, vector<4x4xf32>,
      %18 = arith.index_cast %arg1 : i32 to index
      %c0_12 = arith.constant 0 : index
      %c0_13 = arith.constant 0 : index
      %19 = vector.load %arg7[%18, %c0_12, %c0_13] : memref<1x4x256xf32, #tpu.memory_space<vmem>>, vector<1x4x256xf32>
      %20 = vector.shape_cast %19 : vector<1x4x256xf32> to vector<4x256xf32>
      %21 = vector.shape_cast %13 : vector<4x256xf32> to vector<1x4x256xf32>
      tpu.vector_store %arg7[%18, %c0_12, %c0_13], %21 {strides = array<i32>} : memref<1x4x256xf32, #tpu.memory_space<vmem>>, vector<1x4x256xf32>,
    } else {
    }
    %c1_i32_2 = arith.constant 1 : i32
    %6 = arith.cmpi eq, %arg1, %c1_i32_2 : i32
    %7 = arith.extui %6 : i1 to i32
    %c0_i32_3 = arith.constant 0 : i32
    %8 = arith.cmpi ne, %7, %c0_i32_3 : i32
    scf.if %8 {
      %c0 = arith.constant 0 : index
      %c0_6 = arith.constant 0 : index
      %12 = vector.load %arg5[%c0, %c0_6] : memref<4x4xf32, #tpu.memory_space<vmem>>, vector<4x4xf32>
      %cst = arith.constant dense<0x7F800000> : vector<4xf32>
      %13 = vector.multi_reduction <minimumf>, %12, %cst [1] : vector<4x4xf32> to vector<4xf32>
      %14 = vector.shape_cast %13 : vector<4xf32> to vector<4x1xf32>
      %15 = vector.broadcast %14 : vector<4x1xf32> to vector<4x4xf32>
      %16 = arith.subf %15, %12 : vector<4x4xf32>
      %17 = math.exp %16 : vector<4x4xf32>
      %cst_7 = arith.constant dense<0.000000e+00> : vector<4xf32>
      %18 = vector.multi_reduction <add>, %17, %cst_7 [1] : vector<4x4xf32> to vector<4xf32>
      %19 = vector.shape_cast %18 : vector<4xf32> to vector<4x1xf32>
      %20 = vector.broadcast %19 : vector<4x1xf32> to vector<4x4xf32>
      %21 = arith.divf %17, %20 : vector<4x4xf32>
      %c0_8 = arith.constant 0 : index
      %c0_9 = arith.constant 0 : index
      %22 = memref.load %arg2[%c0_8, %c0_9] : memref<1x1xf32, #tpu.memory_space<smem>>
      %23 = vector.broadcast %22 : f32 to vector<4x4xf32>
      %24 = arith.mulf %23, %21 : vector<4x4xf32>
      %c0_10 = arith.constant 0 : index
      %c0_11 = arith.constant 0 : index
      %25 = vector.load %arg6[%c0_10, %c0_11] : memref<4x4xf32, #tpu.memory_space<vmem>>, vector<4x4xf32>
      tpu.vector_store %arg6[%c0_10, %c0_11], %24 {strides = array<i32>} : memref<4x4xf32, #tpu.memory_space<vmem>>, vector<4x4xf32>,
    } else {
    }
    %c1_i32_4 = arith.constant 1 : i32
    %9 = arith.cmpi sge, %arg1, %c1_i32_4 : i32
    %10 = arith.extui %9 : i1 to i32
    %c0_i32_5 = arith.constant 0 : i32
    %11 = arith.cmpi ne, %10, %c0_i32_5 : i32
    scf.if %11 {
      %c1_i32_6 = arith.constant 1 : i32
      %12 = arith.subi %arg1, %c1_i32_6 : i32
      %13 = arith.index_cast %12 : i32 to index
      %c0 = arith.constant 0 : index
      %c0_7 = arith.constant 0 : index
      %14 = vector.load %arg7[%13, %c0, %c0_7] : memref<1x4x256xf32, #tpu.memory_space<vmem>>, vector<1x4x256xf32>
      %15 = vector.shape_cast %14 : vector<1x4x256xf32> to vector<4x256xf32>
      %c0_8 = arith.constant 0 : index
      %c0_9 = arith.constant 0 : index
      %16 = vector.load %arg6[%c0_8, %c0_9] : memref<4x4xf32, #tpu.memory_space<vmem>>, vector<4x4xf32>
      %cst = arith.constant dense<0.000000e+00> : vector<4x256xf32>
      %17 = tpu.matmul %16, %15, %cst {dimension_numbers = #tpu.dot_dimension_numbers<[1], [0], [0], [1], [0, 0, 1, 1], [], []>} : vector<4x4xf32>, vector<4x256xf32>, vector<4x256xf32> -> vector<4x256xf32>
      %18 = arith.addf %17, %15 : vector<4x256xf32>
      %c0_10 = arith.constant 0 : index
      %c0_11 = arith.constant 0 : index
      %c0_12 = arith.constant 0 : index
      %19 = vector.load %arg4[%c0_10, %c0_11, %c0_12] : memref<1x4x256xf32, #tpu.memory_space<vmem>>, vector<1x4x256xf32>
      %20 = vector.shape_cast %19 : vector<1x4x256xf32> to vector<4x256xf32>
      %21 = vector.shape_cast %18 : vector<4x256xf32> to vector<1x4x256xf32>
      tpu.vector_store %arg4[%c0_10, %c0_11, %c0_12], %21 {strides = array<i32>} : memref<1x4x256xf32, #tpu.memory_space<vmem>>, vector<1x4x256xf32>,
    } else {
    }
    return
  }
  func.func @transform_0(%arg0: i32, %arg1: i32) -> (i32, i32) {
    %c0_i32 = arith.constant 0 : i32
    %c0_i32_0 = arith.constant 0 : i32
    %c0_i32_1 = arith.constant 0 : i32
    return %c0_i32, %c0_i32_0 : i32, i32
  }
  func.func @transform_1(%arg0: i32, %arg1: i32) -> (i32, i32, i32) {
    %c0_i32 = arith.constant 0 : i32
    %0 = arith.minsi %arg1, %c0_i32 : i32
    %c0_i32_0 = arith.constant 0 : i32
    %c0_i32_1 = arith.constant 0 : i32
    return %arg0, %c0_i32_0, %0 : i32, i32, i32
  }
  func.func @transform_2(%arg0: i32, %arg1: i32) -> (i32, i32, i32) {
    %c1_i32 = arith.constant 1 : i32
    %0 = arith.subi %arg1, %c1_i32 : i32
    %c0_i32 = arith.constant 0 : i32
    %1 = arith.maxsi %0, %c0_i32 : i32
    %c0_i32_0 = arith.constant 0 : i32
    %c0_i32_1 = arith.constant 0 : i32
    return %arg0, %c0_i32_0, %1 : i32, i32, i32
  }
}

</mosaic_0001>

<llo_original>
// kernel: tpu_custom_call.1
$region0: #{tpu_custom_call.1}
  #allocation0 [shape = 'u32[]', space=smem, size = 0x4, offset = 0x4, fixed_abs, tag = 'smem constant byte address 0x4 - core index']
  #allocation1 [shape = 'u32[144,128]{1,0:T(1,128)}', space=vmem, size = 0x12000, scoped, tag = 'internal scratch']
  #allocation2 [shape = 'f32[4,4]{1,0:T(4,128)}', space=vmem, size = 0x800, scoped, tag = 'scratch operand']
  #allocation3 [shape = 'f32[4,4]{1,0:T(4,128)}', space=vmem, size = 0x800, scoped, tag = 'scratch operand']
  #allocation4 [shape = 'f32[1,4,256]{2,1,0:T(4,128)}', space=vmem, size = 0x1000, scoped, tag = 'scratch operand']
  #allocation5 [shape = 'f32[1,1]{1,0:T(1,128)S(6)}', space=smem, size = 0x200, scoped, tag = 'scoped memory for tpu_custom_call.1']
  %s0 = inlined_call_operand.<no memory space> [shape: f32[1,1], index: 0, kind: input, shape index: {}]
  %s1 = inlined_call_operand.hbm [shape: f32[2,4,256], index: 1, kind: input, shape index: {}]
  %s2 = inlined_call_operand.hbm [shape: f32[2,4,256], index: 2, kind: output, shape index: {}]
  %s3 = sld [smem:[#allocation0]]
  $region61: #{tpu_custom_call.1} parent=0
    _
  %s5 = ssub.s32 1, %s3
  %s6 = scalar_select 0, %s5, %s3
  %7 = sst [smem:[#allocation5]] %s0
  $region1: #{tpu_custom_call.1} parent=0
    #allocation6 [shape = 'u8[8192]{0}', space=vmem, size = 0x2000, scoped, tag = 'input window, operand 1']
    #allocation7 [shape = 's32[2]{0}', space=sflag, size = 0x8, scoped, tag = 'scoped memory for tpu_custom_call.1']
    #allocation8 [shape = 's32[2]{0}', space=sflag, size = 0x8, scoped, tag = 'scoped memory for tpu_custom_call.1']
    #allocation9 [shape = 'u8[8192]{0}', space=vmem, size = 0x2000, scoped, tag = 'output window, operand 0']
    %8 = vsyncpa [#allocation7], 0
    %s9 = scalar_lea.sflag [#allocation7], 1
    %10 = vsyncpa %s9, 0
    %11 = vsyncpa [#allocation8], 0
    %s12 = scalar_lea.sflag [#allocation8], 1
    %13 = vsyncpa %s12, 0
    loop: start=0, step=1, limit=6
    $region2: #{tpu_custom_call.1} parent=1 // loop_pre_header
      _
    $region3: #{tpu_custom_call.1} parent=1 // loop_header
      %s15 = sphi 0, %s19
      %p16 = scmp.ge.s32.totalorder %s15, 6
      %s22 = sphi 0, %s34
      %s23 = sphi 0, %s30
      %s24 = sphi 0, %s22
      %s25 = sphi 0, %s23
      %s26 = sphi 0, %s24
      %s27 = sphi 0, %s25
      %s35 = sphi 0, %s35
      %s37 = sphi 0, %s35
      %s38 = sphi 0, %s37
      %s52 = sphi 0, %s38
      %s64 = sphi 0, %s66
      %s67 = sphi 0, %s64
      %s68 = sphi 0, %s67
      %s84 = sphi 0, %s68
      %s98 = sphi 0, %s100
      %s101 = sphi 0, %s98
      %s102 = sphi 0, %s101
      %s118 = sphi 0, %s102
    $region4: #{tpu_custom_call.1} parent=1 // loop_header_branch
      %18 = sbr.rel (%p16) target = $region8
    $region5: #{tpu_custom_call.1} parent=1 // loop_body
      %s20 = ssub.s32 %s15, 1
      %s21 = ssub.s32 %s15, 2
      %s28 = sadd.s32 1, %s23
      %p29 = scmp.ge.s32.totalorder %s28, 2
      %s30 = scalar_select %p29, 0, %s28
      %s31 = sadd.s32 1, %s22
      %s32 = scalar_select %p29, %s31, %s22
      %p33 = scmp.ge.s32.totalorder %s32, 2
      %s34 = scalar_select %p33, 0, %s32
      %s36 = sadd.s32 %s35, 1
      %p39 = scmp.eq.s32.totalorder %s15, 3
      %p40 = scmp.ne.s32.totalorder %s35, %s37
      %p41 = scmp.eq.s32.totalorder %s15, 0
      %p42 = por %p40, %p41
      %p43 = scmp.ne.s32.totalorder %s35, %s37
      %p44 = scmp.eq.s32.totalorder %s20, 3
      %p45 = por %p43, %p44
      %p46 = scmp.ne.s32.totalorder %s37, %s38
      %p47 = scmp.eq.s32.totalorder %s20, 0
      %p48 = por %p46, %p47
      %p49 = scmp.ne.s32.totalorder %s37, %s38
      %p50 = scmp.eq.s32.totalorder %s21, 3
      %p51 = por %p49, %p50
      %p53 = scmp.ne.s32.totalorder %s38, %s52
      %p54 = scmp.eq.s32.totalorder %s21, 0
      %p55 = por %p53, %p54
      %p56 = scmp.lt.s32.totalorder %s23, 0
      %s57 = scalar_select %p56, %s23, 0
      %p58 = scmp.lt.s32.totalorder %s30, 0
      %s59 = scalar_select %p58, %s30, 0
      %s60 = ssub.s32 %s22, %s34
      %s61 = ssub.s32 %s57, %s59
      %s62 = sor.u32 %s60, %s61
      %p63 = scmp.eq.s32.totalorder %s62, 0
      %s65 = sadd.s32 %s64, 1
      %s66 = scalar_select %p63, %s64, %s65
      %p69 = pneg %p63
      %p70 = scmp.eq.s32.totalorder %s15, 3
      %p71 = por %p69, %p70
      %p72 = scmp.ne.s32.totalorder %s64, %s67
      %p73 = scmp.eq.s32.totalorder %s15, 0
      %p74 = por %p72, %p73
      %p75 = scmp.ne.s32.totalorder %s64, %s67
      %p76 = scmp.eq.s32.totalorder %s20, 3
      %p77 = por %p75, %p76
      %p78 = scmp.ne.s32.totalorder %s67, %s68
      %p79 = scmp.eq.s32.totalorder %s20, 0
      %p80 = por %p78, %p79
      %p81 = scmp.ne.s32.totalorder %s67, %s68
      %p82 = scmp.eq.s32.totalorder %s21, 3
      %p83 = por %p81, %p82
      %p85 = scmp.ne.s32.totalorder %s68, %s84
      %p86 = scmp.eq.s32.totalorder %s21, 0
      %p87 = por %p85, %p86
      %s88 = ssub.s32 %s23, 1
      %p89 = scmp.gt.s32.totalorder %s88, 0
      %s90 = scalar_select %p89, %s88, 0
      %s91 = ssub.s32 %s30, 1
      %p92 = scmp.gt.s32.totalorder %s91, 0
      %s93 = scalar_select %p92, %s91, 0
      %s94 = ssub.s32 %s22, %s34
      %s95 = ssub.s32 %s90, %s93
      %s96 = sor.u32 %s94, %s95
      %p97 = scmp.eq.s32.totalorder %s96, 0
      %s99 = sadd.s32 %s98, 1
      %s100 = scalar_select %p97, %s98, %s99
      %p103 = pneg %p97
      %p104 = scmp.eq.s32.totalorder %s15, 3
      %p105 = por %p103, %p104
      %p106 = scmp.ne.s32.totalorder %s98, %s101
      %p107 = scmp.eq.s32.totalorder %s15, 0
      %p108 = por %p106, %p107
      %p109 = scmp.ne.s32.totalorder %s98, %s101
      %p110 = scmp.eq.s32.totalorder %s20, 3
      %p111 = por %p109, %p110
      %p112 = scmp.ne.s32.totalorder %s101, %s102
      %p113 = scmp.eq.s32.totalorder %s20, 0
      %p114 = por %p112, %p113
      %p115 = scmp.ne.s32.totalorder %s101, %s102
      %p116 = scmp.eq.s32.totalorder %s21, 3
      %p117 = por %p115, %p116
      %p119 = scmp.ne.s32.totalorder %s102, %s118
      %p120 = scmp.eq.s32.totalorder %s21, 0
      %p121 = por %p119, %p120
      %p122 = scmp.le.s32.totalorder 1, %s15
      %p123 = scmp.lt.s32.totalorder %s15, 5
      %p124 = pnand %p122, %p123
      %p125 = pneg %p124
      // Predicated region
      $region9: #{tpu_custom_call.1} parent=5 // pred_check
        _
      $region10: #{tpu_custom_call.1} parent=5 // pred_check_branch
        %127 = sbr.rel (%p124) target = $region12
      $region11: #{tpu_custom_call.1} parent=5 // pred_region
        %s128 = ssub.s32 %s15, 1
        // Predicated region
        $region13: #{tpu_custom_call.1} parent=11 // pred_check
          %p129 = pneg %p48
        $region14: #{tpu_custom_call.1} parent=11 // pred_check_branch
          %131 = sbr.rel (%p129) target = $region16
        $region15: #{tpu_custom_call.1} parent=11 // pred_region
          _
        $region16: #{tpu_custom_call.1} parent=11 // pred_fallthru
          _
      $region12: #{tpu_custom_call.1} parent=5 // pred_fallthru
        _
      %p132 = scmp.lt.s32.totalorder %s15, 4
      // Predicated region
      $region17: #{tpu_custom_call.1} parent=5 // pred_check
        %p133 = pneg %p132
      $region18: #{tpu_custom_call.1} parent=5 // pred_check_branch
        %135 = sbr.rel (%p133) target = $region20
      $region19: #{tpu_custom_call.1} parent=5 // pred_region
        // Predicated region
        $region21: #{tpu_custom_call.1} parent=19 // pred_check
          %p136 = pneg %p74
        $region22: #{tpu_custom_call.1} parent=19 // pred_check_branch
          %138 = sbr.rel (%p136) target = $region24
        $region23: #{tpu_custom_call.1} parent=19 // pred_region
          %s139 = sand.u32 %s64, 1
          %s140 = scalar_lea.sflag [#allocation7], %s139
          %s141 = sand.u32 %s64, 1
          %s142 = smul.addr %s141, 8
          %s143 = scalar_lea.vmem [#allocation6], %s142
          %p144 = scmp.lt.s32.totalorder %s23, 0
          %s145 = scalar_select %p144, %s23, 0
          %s146 = smul.u32 2, %s145
          %s148 = ssub.s32 128, 128
          %149 = vsyncadd %s140, %s148
          %s150 = smul.addr %s22, 2
          %s151 = sadd.s32 %s146, %s150
          %s152 = smul.addr %s151, 64
          %s153 = scalar_lea.hbm %s1, %s152
          %s155 = sshll.u32 %s143, 4
          %s156 = int_to_ptr.vmem [resolvable:$true] %s155
          %158 = dma.hbm_to_vmem [thread:$0]  %s153, 128, %s156, %s140
        $region24: #{tpu_custom_call.1} parent=19 // pred_fallthru
          _
      $region20: #{tpu_custom_call.1} parent=5 // pred_fallthru
        _
      %p159 = scmp.le.s32.totalorder 1, %s15
      %p160 = scmp.lt.s32.totalorder %s15, 5
      %p161 = pnand %p159, %p160
      %p162 = pneg %p161
      // Predicated region
      $region25: #{tpu_custom_call.1} parent=5 // pred_check
        _
      $region26: #{tpu_custom_call.1} parent=5 // pred_check_branch
        %164 = sbr.rel (%p161) target = $region28
      $region27: #{tpu_custom_call.1} parent=5 // pred_region
        %s165 = ssub.s32 %s15, 1
        %s166 = sand.u32 %s67, 1
        %s167 = scalar_lea.sflag [#allocation7], %s166
        %s168 = sand.u32 %s67, 1
        %s169 = smul.addr %s168, 8
        %s170 = scalar_lea.vmem [#allocation6], %s169
        // Predicated region
        $region29: #{tpu_custom_call.1} parent=27 // pred_check
          %p171 = pneg %p80
        $region30: #{tpu_custom_call.1} parent=27 // pred_check_branch
          %173 = sbr.rel (%p171) target = $region32
        $region31: #{tpu_custom_call.1} parent=27 // pred_region
          %174 = dma.done %s167, 128
        $region32: #{tpu_custom_call.1} parent=27 // pred_fallthru
          _
        %p175 = pneg %p48
        %p176 = pneg %p45
        %s177 = sand.u32 %s67, 1
        %s178 = scalar_lea.sflag [#allocation7], %s177
        %s179 = sand.u32 %s67, 1
        %s180 = smul.addr %s179, 8
        %s181 = scalar_lea.vmem [#allocation6], %s180
        %p182 = pneg %p80
        %p183 = pneg %p77
        %p184 = pneg %p114
        %p185 = pneg %p111
        %s186 = sand.u32 %s101, 1
        %s187 = scalar_lea.sflag [#allocation8], %s186
        %s188 = sand.u32 %s101, 1
        %s189 = smul.addr %s188, 8
        %s190 = scalar_lea.vmem [#allocation9], %s189
        %p191 = scmp.lt.s32.totalorder %s25, 0
        %s192 = scalar_select %p191, %s25, 0
        %s193 = smul.u32 2, %s192
        %s194 = ssub.s32 %s25, 1
        %p195 = scmp.gt.s32.totalorder %s194, 0
        %s196 = scalar_select %p195, %s194, 0
        %s197 = smul.u32 2, %s196
        %p198 = scmp.eq.s32.totalorder %s25, 0
        // Predicated region
        $region33: #{tpu_custom_call.1} parent=27 // pred_check
          %p199 = pneg %p198
        $region34: #{tpu_custom_call.1} parent=27 // pred_check_branch
          %201 = sbr.rel (%p199) target = $region36
        $region35: #{tpu_custom_call.1} parent=27 // pred_region
          %vm202 = vcmask 27648
          %203 = vst.msk [vmem:[#allocation2] sm:$0xf] %vm202, 0.0
        $region36: #{tpu_custom_call.1} parent=27 // pred_fallthru
          _
        %p204 = scmp.lt.s32.totalorder %s25, 1
        // Predicated region
        $region37: #{tpu_custom_call.1} parent=27 // pred_check
          %p205 = pneg %p204
        $region38: #{tpu_custom_call.1} parent=27 // pred_check_branch
          %207 = sbr.rel (%p205) target = $region40
        $region39: #{tpu_custom_call.1} parent=27 // pred_region
          %v208 = vld [vmem:[%s170] sm:$0xff]
          %v209 = vld [vmem:[#allocation2] sm:$0xf]
          %v211 = vcombine.high %v208, %v208
          %213 = vmatprep.subr.mxu0 0.0
          %214 = vmatpush1.xpose.msra.mxu0 0.0
          %215 = vmatprep.subr.mxu0 0.0
          %216 = vmatpush1.xpose.msra.mxu0 0.0
          %217 = vmatprep.subr.mxu0 0.0
          %218 = vmatpush1.xpose.msra.mxu0 0.0
          %219 = vmatprep.subr.mxu0 0.0
          %220 = vmatpush1.xpose.msra.mxu0 0.0
          %221 = vmatprep.subr.mxu0 0.0
          %222 = vmatpush1.xpose.msra.mxu0 0.0
          %223 = vmatprep.subr.mxu0 0.0
          %224 = vmatpush1.xpose.msra.mxu0 0.0
          %225 = vmatprep.subr.mxu0 0.0
          %226 = vmatpush1.xpose.msra.mxu0 0.0
          %227 = vmatprep.subr.mxu0 0.0
          %228 = vmatpush1.xpose.msra.mxu0 0.0
          %229 = vmatprep.subr.mxu0 0.0
          %230 = vmatpush1.xpose.msra.mxu0 0.0
          %231 = vmatprep.subr.mxu0 0.0
          %232 = vmatpush1.xpose.msra.mxu0 0.0
          %233 = vmatprep.subr.mxu0 0.0
          %234 = vmatpush1.xpose.msra.mxu0 0.0
          %235 = vmatprep.subr.mxu0 0.0
          %236 = vmatpush1.xpose.msra.mxu0 0.0
          %237 = vmatprep.subr.mxu0 0.0
          %238 = vmatpush1.xpose.msra.mxu0 0.0
          %239 = vmatprep.subr.mxu0 0.0
          %240 = vmatpush1.xpose.msra.mxu0 0.0
          %241 = vmatprep.subr.mxu0 0.0
          %242 = vmatpush1.xpose.msra.mxu0 0.0
          %243 = vmatprep.subr.mxu0 %v211
          %244 = vmatpush1.xpose.msra.mxu0 %v208
          %245 = vmatprep.subr.mxu0 0.0
          %246 = vmatpush2.xpose.msra.mxu0 0.0
          %247 = vmatprep.subr.mxu0 0.0
          %248 = vmatpush2.xpose.msra.mxu0 0.0
          %249 = vmatprep.subr.mxu0 0.0
          %250 = vmatpush2.xpose.msra.mxu0 0.0
          %251 = vmatprep.subr.mxu0 0.0
          %252 = vmatpush2.xpose.msra.mxu0 0.0
          %253 = vmatprep.subr.mxu0 0.0
          %254 = vmatpush2.xpose.msra.mxu0 0.0
          %255 = vmatprep.subr.mxu0 0.0
          %256 = vmatpush2.xpose.msra.mxu0 0.0
          %257 = vmatprep.subr.mxu0 0.0
          %258 = vmatpush2.xpose.msra.mxu0 0.0
          %259 = vmatprep.subr.mxu0 0.0
          %260 = vmatpush2.xpose.msra.mxu0 0.0
          %261 = vmatprep.subr.mxu0 0.0
          %262 = vmatpush2.xpose.msra.mxu0 0.0
          %263 = vmatprep.subr.mxu0 0.0
          %264 = vmatpush2.xpose.msra.mxu0 0.0
          %265 = vmatprep.subr.mxu0 0.0
          %266 = vmatpush2.xpose.msra.mxu0 0.0
          %267 = vmatprep.subr.mxu0 0.0
          %268 = vmatpush2.xpose.msra.mxu0 0.0
          %269 = vmatprep.subr.mxu0 0.0
          %270 = vmatpush2.xpose.msra.mxu0 0.0
          %271 = vmatprep.subr.mxu0 0.0
          %272 = vmatpush2.xpose.msra.mxu0 0.0
          %273 = vmatprep.subr.mxu0 0.0
          %274 = vmatpush2.xpose.msra.mxu0 0.0
          %275 = vmatprep.subr.mxu0 0.0
          %276 = vmatpush2.xpose.msra.mxu0 0.0
          %277 = vmatprep.mubr.f32.mxu0 %v211
          %278 = vmatmul.mubr.f32.gmra.mxu0 %v208
          %v279 = vpop.f32.mrf.mxu0
          %v280 = vadd.f32 0.0, %v279
          %v281 = vpop.f32.mrf.mxu0
          %282 = vdwg.mxu0
          %v283 = vadd.f32 %v209, %v280
          %vm284 = vcmask 27648
          %285 = vst.msk [vmem:[#allocation2] sm:$0xf] %vm284, %v283
          %s286 = smul.u32 %s25, 2
          %s287 = smul.addr %s286, 4
          %s288 = scalar_lea.vmem [#allocation4], %s287
          %289 = vst [vmem:[%s288] sm:$0xff] %v208
        $region40: #{tpu_custom_call.1} parent=27 // pred_fallthru
          _
        %p290 = scmp.eq.s32.totalorder %s25, 1
        // Predicated region
        $region41: #{tpu_custom_call.1} parent=27 // pred_check
          %p291 = pneg %p290
        $region42: #{tpu_custom_call.1} parent=27 // pred_check_branch
          %293 = sbr.rel (%p291) target = $region44
        $region43: #{tpu_custom_call.1} parent=27 // pred_region
          %v294 = vld [vmem:[#allocation2] sm:$0xf]
          %vm295 = vcmask 27648
          %v296 = vsel %vm295, %v294, inf
          %297 = vmin.xlane.f32.xlu0 %v296
          %v298 = vpop.xlane.xlu0 %297
          %v299 = vsub.f32 %v298, %v294
          %v300 = vmul.f32 %v299, 1.442695
          %v301 = vpow.pop %v300
          %v302 = vsel %vm295, %v301, 0.0
          %303 = vadd.xlane.f32.xlu0 %v302
          %v304 = vpop.xlane.xlu0 %303
          %v305 = vrcp.pop %v304
          %v306 = vmul.f32 %v301, %v305
          %s307 = sld [smem:[#allocation5]]
          %v308 = vstv %s307
          %v309 = vmul.f32 %v308, %v306
          %310 = vst.msk [vmem:[#allocation3] sm:$0xf] %vm295, %v309
        $region44: #{tpu_custom_call.1} parent=27 // pred_fallthru
          _
        %p311 = scmp.ge.s32.totalorder %s25, 1
        // Predicated region
        $region45: #{tpu_custom_call.1} parent=27 // pred_check
          %p312 = pneg %p311
        $region46: #{tpu_custom_call.1} parent=27 // pred_check_branch
          %314 = sbr.rel (%p312) target = $region48
        $region47: #{tpu_custom_call.1} parent=27 // pred_region
          %s315 = ssub.s32 %s25, 1
          %s316 = smul.u32 %s315, 2
          %s317 = smul.addr %s316, 4
          %s318 = scalar_lea.vmem [#allocation4], %s317
          %v319 = vld [vmem:[%s318] sm:$0xff]
          %v320 = vld [vmem:[#allocation3] sm:$0xf]
          %v322 = vcombine.high %v319, %v319
          %vm324 = vcmask 31744
          %v326 = vsel %vm324, %v320, 0
          %vm328 = vcmask 1043456
          %v329 = vsel %vm328, %v319, 0
          %v331 = vsel %vm328, %v322, 0
          %333 = vmatprep.subr.mxu0 0.0
          %334 = vmatpush1.msra.mxu0 0.0
          %335 = vmatprep.subr.mxu0 0.0
          %336 = vmatpush1.msra.mxu0 0.0
          %337 = vmatprep.subr.mxu0 0.0
          %338 = vmatpush1.msra.mxu0 0.0
          %339 = vmatprep.subr.mxu0 0.0
          %340 = vmatpush1.msra.mxu0 0.0
          %341 = vmatprep.subr.mxu0 0.0
          %342 = vmatpush1.msra.mxu0 0.0
          %343 = vmatprep.subr.mxu0 0.0
          %344 = vmatpush1.msra.mxu0 0.0
          %345 = vmatprep.subr.mxu0 0.0
          %346 = vmatpush1.msra.mxu0 0.0
          %347 = vmatprep.subr.mxu0 0.0
          %348 = vmatpush1.msra.mxu0 0.0
          %349 = vmatprep.subr.mxu0 0.0
          %350 = vmatpush1.msra.mxu0 0.0
          %351 = vmatprep.subr.mxu0 0.0
          %352 = vmatpush1.msra.mxu0 0.0
          %353 = vmatprep.subr.mxu0 0.0
          %354 = vmatpush1.msra.mxu0 0.0
          %355 = vmatprep.subr.mxu0 0.0
          %356 = vmatpush1.msra.mxu0 0.0
          %357 = vmatprep.subr.mxu0 0.0
          %358 = vmatpush1.msra.mxu0 0.0
          %359 = vmatprep.subr.mxu0 0.0
          %360 = vmatpush1.msra.mxu0 0.0
          %361 = vmatprep.subr.mxu0 0.0
          %362 = vmatpush1.msra.mxu0 0.0
          %363 = vmatprep.subr.mxu0 %v331
          %364 = vmatpush1.msra.mxu0 %v329
          %365 = vmatprep.subr.mxu0 0.0
          %366 = vmatpush2.msra.mxu0 0.0
          %367 = vmatprep.subr.mxu0 0.0
          %368 = vmatpush2.msra.mxu0 0.0
          %369 = vmatprep.subr.mxu0 0.0
          %370 = vmatpush2.msra.mxu0 0.0
          %371 = vmatprep.subr.mxu0 0.0
          %372 = vmatpush2.msra.mxu0 0.0
          %373 = vmatprep.subr.mxu0 0.0
          %374 = vmatpush2.msra.mxu0 0.0
          %375 = vmatprep.subr.mxu0 0.0
          %376 = vmatpush2.msra.mxu0 0.0
          %377 = vmatprep.subr.mxu0 0.0
          %378 = vmatpush2.msra.mxu0 0.0
          %379 = vmatprep.subr.mxu0 0.0
          %380 = vmatpush2.msra.mxu0 0.0
          %381 = vmatprep.subr.mxu0 0.0
          %382 = vmatpush2.msra.mxu0 0.0
          %383 = vmatprep.subr.mxu0 0.0
          %384 = vmatpush2.msra.mxu0 0.0
          %385 = vmatprep.subr.mxu0 0.0
          %386 = vmatpush2.msra.mxu0 0.0
          %387 = vmatprep.subr.mxu0 0.0
          %388 = vmatpush2.msra.mxu0 0.0
          %389 = vmatprep.subr.mxu0 0.0
          %390 = vmatpush2.msra.mxu0 0.0
          %391 = vmatprep.subr.mxu0 0.0
          %392 = vmatpush2.msra.mxu0 0.0
          %393 = vmatprep.subr.mxu0 0.0
          %394 = vmatpush2.msra.mxu0 0.0
          %395 = vmatprep.subr.mxu0 0.0
          %396 = vmatpush2.msra.mxu0 0.0
          %397 = vmatprep.mubr.f32.mxu0 0.0
          %398 = vmatmul.mubr.f32.gmra.mxu0 %v326
          %v399 = vpop.f32.mrf.mxu0
          %v400 = vadd.f32 %v319, %v399
          %v401 = vpop.f32.mrf.mxu0
          %v402 = vadd.f32 %v322, %v401
          %403 = vdwg.mxu0
          %v406 = vcombine.low %v400, %v402
          %408 = vst [vmem:[%s190] sm:$0xff] %v406
        $region48: #{tpu_custom_call.1} parent=27 // pred_fallthru
          _
        %s409 = sand.u32 %s101, 1
        %s410 = scalar_lea.sflag [#allocation8], %s409
        %s411 = sand.u32 %s101, 1
        %s412 = smul.addr %s411, 8
        %s413 = scalar_lea.vmem [#allocation9], %s412
        // Predicated region
        $region49: #{tpu_custom_call.1} parent=27 // pred_check
          %p414 = pneg %p111
        $region50: #{tpu_custom_call.1} parent=27 // pred_check_branch
          %416 = sbr.rel (%p414) target = $region52
        $region51: #{tpu_custom_call.1} parent=27 // pred_region
          %s417 = ssub.s32 %s25, 1
          %p418 = scmp.gt.s32.totalorder %s417, 0
          %s419 = scalar_select %p418, %s417, 0
          %s420 = smul.u32 2, %s419
          %s422 = ssub.s32 128, 128
          %423 = vsyncadd %s410, %s422
          %s424 = smul.addr %s24, 2
          %s425 = sadd.s32 %s420, %s424
          %s426 = smul.addr %s425, 64
          %s427 = scalar_lea.hbm %s2, %s426
          %s429 = sshll.u32 %s413, 4
          %s430 = int_to_ptr.vmem [resolvable:$true] %s429
          %432 = dma.vmem_to_hbm [thread:$0]  %s430, 128, %s427, %s410
        $region52: #{tpu_custom_call.1} parent=27 // pred_fallthru
          _
      $region28: #{tpu_custom_call.1} parent=5 // pred_fallthru
        _
      %p433 = scmp.le.s32.totalorder 2, %s15
      // Predicated region
      $region53: #{tpu_custom_call.1} parent=5 // pred_check
        %p434 = pneg %p433
      $region54: #{tpu_custom_call.1} parent=5 // pred_check_branch
        %436 = sbr.rel (%p434) target = $region56
      $region55: #{tpu_custom_call.1} parent=5 // pred_region
        %s437 = ssub.s32 %s15, 2
        // Predicated region
        $region57: #{tpu_custom_call.1} parent=55 // pred_check
          %p438 = pneg %p117
        $region58: #{tpu_custom_call.1} parent=55 // pred_check_branch
          %440 = sbr.rel (%p438) target = $region60
        $region59: #{tpu_custom_call.1} parent=55 // pred_region
          %s441 = sand.u32 %s102, 1
          %s442 = scalar_lea.sflag [#allocation8], %s441
          %s443 = sand.u32 %s102, 1
          %s444 = smul.addr %s443, 8
          %s445 = scalar_lea.vmem [#allocation9], %s444
          %446 = dma.done %s442, 128
        $region60: #{tpu_custom_call.1} parent=55 // pred_fallthru
          _
      $region56: #{tpu_custom_call.1} parent=5 // pred_fallthru
        _
    $region6: #{tpu_custom_call.1} parent=1 // loop_footer
      %s19 = sadd.s32 1, %s15
    $region7: #{tpu_custom_call.1} parent=1 // loop_footer_branch
      %14 = sbr.rel target = $region3
    $region8: #{tpu_custom_call.1} parent=1 // loop_exit
      _
    %447 = vsyncpa [#allocation7], 1
    %s448 = scalar_lea.sflag [#allocation7], 1
    %449 = vsyncpa %s448, 1
    %450 = vsyncpa [#allocation8], 1
    %s451 = scalar_lea.sflag [#allocation8], 1
    %452 = vsyncpa %s451, 1

</llo_original>
